<compile_context>
chip_gen: v7x
topology: tpu7x:2x2x1
jax: 0.10.0
libtpu: 0.0.40
codegen_flags: <defaults>
</compile_context>

<pallas_src>
import jax
import jax.numpy as jnp
from jax.experimental import pallas as pl
from jax.experimental.pallas import tpu as pltpu

_LANES = 128


def _cdiv(a: int, b: int) -> int:
    return (a + b - 1) // b


def _pick_max_tile_rows() -> int:
    """Rows per grid step.  The x block lane-pads F -> 128 in VMEM, i.e.
    tile_rows * 512 B per buffer (double buffered), so cap lower on 64 MiB
    VMEM parts (v7x) and go bigger on 128 MiB parts (v5e/v6e)."""
    try:
        vmem_bytes = pltpu.get_tpu_info().vmem_capacity_bytes
    except Exception:
        vmem_bytes = 64 << 20  # conservative fallback (v7x-sized)
    return 32768 if vmem_bytes >= (100 << 20) else 16384


def _projection_head_kernel(x_ref, w0_ref, b0_ref, w1_ref, b1_ref, o_ref):
    # x_ref : (tile_rows, F)            -- streamed batch rows (last block may be partial)
    # w0_ref: (F, H),  b0_ref: (1, H)   -- linear_0, VMEM-resident across the grid
    # w1_ref: (1, H)                    -- linear_1 weight with BatchNorm folded in
    # b1_ref: (1,)                      -- folded linear_1 bias, SMEM scalar
    # o_ref : (1, s, 128)               -- lane-dense per-row outputs, s = tile_rows // 128
    s = o_ref.shape[1]

    # Loop-invariant operands: load once per grid step (a handful of vregs).
    w0 = w0_ref[...]
    b0 = b0_ref[...]
    w1 = w1_ref[...]
    b1 = b1_ref[0]

    def body(g, carry):
        row0 = pl.multiple_of(g * _LANES, _LANES)
        xg = x_ref[pl.ds(row0, _LANES), :]                                # (128, F)

        # ---- linear_0 ----
        h = jnp.dot(xg, w0, preferred_element_type=jnp.float32) + b0     # (128, H) f32

        # ---- dropout: identity in eval mode ----

        # ---- GELU (exact erf form, matches torch.nn.GELU default) ----
        h = 0.5 * h * (1.0 + jax.lax.erf(h * jnp.float32(0.7071067811865476)))

        # ---- BatchNorm (folded) + linear_1: (1,H) . (128,H)^T -> (1,128) lane-dense ----
        row = jax.lax.dot_general(w1, h, (((1,), (1,)), ((), ())),
                                  preferred_element_type=jnp.float32)
        o_ref[0, pl.ds(g, 1), :] = (row + b1).astype(o_ref.dtype)
        return carry

    unroll = 4 if s % 4 == 0 else (2 if s % 2 == 0 else 1)
    jax.lax.fori_loop(0, s, body, 0, unroll=unroll)


def _fold_batchnorm(gamma, beta, running_mean, running_var, w1, b1, eps=1e-5):
    """Fold eval-mode BatchNorm1d into linear_1: BN(h) @ w1 + b1 == h @ w1_eff + b1_eff."""
    gamma = gamma.reshape(-1)
    beta = beta.reshape(-1)
    mean = running_mean.reshape(-1)
    var = running_var.reshape(-1)
    w1c = w1.reshape(-1)                                        # (H,)
    scale = gamma * jax.lax.rsqrt(var + jnp.float32(eps))       # (H,)
    shift = beta - mean * scale                                  # (H,)
    w1_eff = (w1c * scale).reshape(1, -1)                        # (1, H)
    b1_eff = (b1.reshape(()) + jnp.sum(shift * w1c)).reshape(1)  # (1,)  -> SMEM scalar
    return w1_eff, b1_eff


@jax.jit
def projection_head_forward(x, w0, b0, gamma, beta, running_mean, running_var,
                            w1, b1):
    n, f = x.shape
    h_dim = w0.shape[1]

    w1_eff, b1_eff = _fold_batchnorm(gamma, beta, running_mean, running_var, w1, b1)
    b0_row = b0.reshape(1, h_dim)

    # ---- row tiling -----------------------------------------------------------
    max_tile_rows = _pick_max_tile_rows()
    groups = _cdiv(n, _LANES)                       # number of 128-row output groups
    num_tiles = _cdiv(groups, max_tile_rows // _LANES)
    if groups >= 2:
        num_tiles = max(num_tiles, 2)               # keep both v7x TensorCores busy
    groups_per_tile = _cdiv(groups, num_tiles)
    tile_rows = groups_per_tile * _LANES

    # The grid over-covers the row dimension; Pallas handles the partial final x
    # block (garbage rows only feed outputs that the wrapper slices away), so no
    # full-array pad/copy of x is needed.  Only the trivial n < 128 case pads.
    if tile_rows > n:
        x = jnp.pad(x, ((0, tile_rows - n), (0, 0)))

    covered_rows = num_tiles * tile_rows
    cost = pl.CostEstimate(
        flops=2 * covered_rows * h_dim * (f + 1),
        transcendentals=covered_rows * h_dim,
        bytes_accessed=4 * (n * f + f * h_dim + 2 * h_dim + 1 + covered_rows),
    )

    x_block_vmem = tile_rows * _LANES * 4            # F lane-pads to 128 in VMEM
    out_block_vmem = groups_per_tile * _LANES * 4
    vmem_limit = int(2 * (x_block_vmem + out_block_vmem) + (8 << 20))

    out3 = pl.pallas_call(
        _projection_head_kernel,
        out_shape=jax.ShapeDtypeStruct((num_tiles, groups_per_tile, _LANES), x.dtype),
        grid=(num_tiles,),
        in_specs=[
            pl.BlockSpec((tile_rows, f), lambda i: (i, 0)),      # x rows: streamed
            pl.BlockSpec((f, h_dim), lambda i: (0, 0)),          # w0: VMEM-resident
            pl.BlockSpec((1, h_dim), lambda i: (0, 0)),          # b0
            pl.BlockSpec((1, h_dim), lambda i: (0, 0)),          # w1 (BN folded)
            pl.BlockSpec(memory_space=pltpu.MemorySpace.SMEM),   # b1 (BN folded) scalar
        ],
        out_specs=pl.BlockSpec((1, groups_per_tile, _LANES), lambda i: (i, 0, 0)),
        compiler_params=pltpu.CompilerParams(
            dimension_semantics=("parallel",),
            vmem_limit_bytes=vmem_limit,
        ),
        cost_estimate=cost,
    )(x, w0, b0_row, w1_eff, b1_eff)

    # (num_tiles, groups_per_tile, 128) lane-dense slab -> (n, 1)
    return out3.reshape(-1)[:n].reshape(n, 1)


def init_params(key, in_features, hidden_dim=32):
    """Deterministic parameter init mirroring the PyTorch module's shapes."""
    k0, k1, k2, k3, k4, k5 = jax.random.split(key, 6)
    bound0 = 1.0 / jnp.sqrt(in_features)
    bound1 = 1.0 / jnp.sqrt(hidden_dim)
    # Stored transposed relative to torch: (F, H) so the kernel does X @ W directly.
    w0 = jax.random.uniform(k0, (in_features, hidden_dim), jnp.float32, -bound0, bound0)
    b0 = jax.random.uniform(k1, (1, hidden_dim), jnp.float32, -bound0, bound0)
    w1 = jax.random.uniform(k2, (hidden_dim, 1), jnp.float32, -bound1, bound1)
    b1 = jax.random.uniform(k3, (1, 1), jnp.float32, -bound1, bound1)
    gamma = 1.0 + 0.1 * jax.random.normal(k4, (1, hidden_dim), jnp.float32)
    beta = 0.1 * jax.random.normal(k5, (1, hidden_dim), jnp.float32)
    running_mean = jnp.zeros((1, hidden_dim), jnp.float32)
    running_var = jnp.ones((1, hidden_dim), jnp.float32)
    return w0, b0, gamma, beta, running_mean, running_var, w1, b1


def reference_forward(x, w0, b0, gamma, beta, running_mean, running_var, w1, b1):
    h = x @ w0 + b0
    h = 0.5 * h * (1.0 + jax.lax.erf(h / jnp.sqrt(2.0)))
    h = (h - running_mean) * jax.lax.rsqrt(running_var + 1e-5) * gamma + beta
    return h @ w1 + b1


if __name__ == "__main__":
    key = jax.random.PRNGKey(0)
    kx, kx2, kp = jax.random.split(key, 3)

    batch, in_features, hidden_dim = 8, 16, 32
    x = jax.random.normal(kx, (batch, in_features), jnp.float32)
    params = init_params(kp, in_features, hidden_dim)

    out = projection_head_forward(x, *params)
    jax.block_until_ready(out)
    ref = reference_forward(x, *params)
    assert out.shape == (batch, 1), out.shape
    assert jnp.allclose(out, ref, atol=1e-4, rtol=1e-4), (out, ref)

    # Second shape: >=2-tile grid + partial (non-divisible) final x block path.
    batch2 = 4500
    x2 = jax.random.normal(kx2, (batch2, in_features), jnp.float32)
    out2 = projection_head_forward(x2, *params)
    jax.block_until_ready(out2)
    ref2 = reference_forward(x2, *params)
    assert out2.shape == (batch2, 1), out2.shape
    assert jnp.allclose(out2, ref2, atol=1e-4, rtol=1e-4)

    print("KERNEL_OK")
</pallas_src>

<mosaic_0001>
module attributes {stable_mosaic.version = 11 : i64} {
  func.func @_projection_head_kernel(%arg0: i32, %arg1: memref<128x16xf32, #tpu.memory_space<vmem>>, %arg2: memref<16x32xf32, #tpu.memory_space<vmem>>, %arg3: memref<1x32xf32, #tpu.memory_space<vmem>>, %arg4: memref<1x32xf32, #tpu.memory_space<vmem>>, %arg5: memref<1xf32, #tpu.memory_space<smem>>, %arg6: memref<1x1x128xf32, #tpu.memory_space<vmem>>) attributes {dimension_semantics = [#tpu.dimension_semantics<parallel>], iteration_bounds = array<i64: 1>, scalar_prefetch = 0 : i64, scratch_operands = 0 : i64, tpu.core_type = #tpu.core_type<tc>, window_params = [{transform_indices = @transform_0, window_bounds = array<i64: 128, 16>}, {pipeline_mode = #tpu.pipeline_mode<synchronous>, transform_indices = @transform_1, window_bounds = array<i64: 16, 32>}, {pipeline_mode = #tpu.pipeline_mode<synchronous>, transform_indices = @transform_2, window_bounds = array<i64: 1, 32>}, {pipeline_mode = #tpu.pipeline_mode<synchronous>, transform_indices = @transform_3, window_bounds = array<i64: 1, 32>}, {transform_indices = @transform_4, window_bounds = array<i64: 1>}, {transform_indices = @transform_5, window_bounds = array<i64: 1, 1, 128>}]} {
    %c0 = arith.constant 0 : index
    %c0_0 = arith.constant 0 : index
    %0 = vector.load %arg2[%c0, %c0_0] : memref<16x32xf32, #tpu.memory_space<vmem>>, vector<16x32xf32>
    %c0_1 = arith.constant 0 : index
    %c0_2 = arith.constant 0 : index
    %1 = vector.load %arg3[%c0_1, %c0_2] : memref<1x32xf32, #tpu.memory_space<vmem>>, vector<1x32xf32>
    %c0_3 = arith.constant 0 : index
    %c0_4 = arith.constant 0 : index
    %2 = vector.load %arg4[%c0_3, %c0_4] : memref<1x32xf32, #tpu.memory_space<vmem>>, vector<1x32xf32>
    %c0_5 = arith.constant 0 : index
    %3 = memref.load %arg5[%c0_5] : memref<1xf32, #tpu.memory_space<smem>>
    %c0_i32 = arith.constant 0 : i32
    %c128_i32 = arith.constant 128 : i32
    %4 = arith.muli %c0_i32, %c128_i32 : i32
    %5 = tpu.assume_multiple %4, 128 : i32
    %6 = arith.index_cast %5 : i32 to index
    %c0_6 = arith.constant 0 : index
    %7 = vector.load %arg1[%6, %c0_6] : memref<128x16xf32, #tpu.memory_space<vmem>>, vector<128x16xf32>
    %cst = arith.constant dense<0.000000e+00> : vector<128x32xf32>
    %8 = tpu.matmul %7, %0, %cst {dimension_numbers = #tpu.dot_dimension_numbers<[1], [0], [0], [1], [0, 0, 1, 1], [], []>} : vector<128x16xf32>, vector<16x32xf32>, vector<128x32xf32> -> vector<128x32xf32>
    %9 = vector.broadcast %1 : vector<1x32xf32> to vector<128x32xf32>
    %10 = arith.addf %8, %9 : vector<128x32xf32>
    %cst_7 = arith.constant 5.000000e-01 : f32
    %11 = vector.broadcast %cst_7 : f32 to vector<128x32xf32>
    %12 = arith.mulf %11, %10 : vector<128x32xf32>
    %cst_8 = arith.constant 0.707106769 : f32
    %13 = vector.broadcast %cst_8 : f32 to vector<128x32xf32>
    %14 = arith.mulf %10, %13 : vector<128x32xf32>
    %15 = math.erf %14 : vector<128x32xf32>
    %cst_9 = arith.constant 1.000000e+00 : f32
    %16 = vector.broadcast %cst_9 : f32 to vector<128x32xf32>
    %17 = arith.addf %16, %15 : vector<128x32xf32>
    %18 = arith.mulf %12, %17 : vector<128x32xf32>
    %cst_10 = arith.constant dense<0.000000e+00> : vector<1x128xf32>
    %19 = tpu.matmul %2, %18, %cst_10 {dimension_numbers = #tpu.dot_dimension_numbers<[1], [1], [0], [0], [0, 0, 1, 0], [], []>} : vector<1x32xf32>, vector<128x32xf32>, vector<1x128xf32> -> vector<1x128xf32>
    %20 = vector.broadcast %3 : f32 to vector<1x128xf32>
    %21 = arith.addf %19, %20 : vector<1x128xf32>
    %c0_11 = arith.constant 0 : index
    %22 = arith.index_cast %c0_i32 : i32 to index
    %c0_12 = arith.constant 0 : index
    %23 = vector.load %arg6[%c0_11, %22, %c0_12] : memref<1x1x128xf32, #tpu.memory_space<vmem>>, vector<1x1x128xf32>
    %24 = vector.shape_cast %23 : vector<1x1x128xf32> to vector<1x128xf32>
    %25 = vector.shape_cast %21 : vector<1x128xf32> to vector<1x1x128xf32>
    tpu.vector_store %arg6[%c0_11, %22, %c0_12], %25 {strides = array<i32>} : memref<1x1x128xf32, #tpu.memory_space<vmem>>, vector<1x1x128xf32>,
    %c1_i32 = arith.constant 1 : i32
    return
  }
  func.func @transform_0(%arg0: i32) -> (i32, i32) {
    %c0_i32 = arith.constant 0 : i32
    %c0_i32_0 = arith.constant 0 : i32
    return %arg0, %c0_i32 : i32, i32
  }
  func.func @transform_1(%arg0: i32) -> (i32, i32) {
    %c0_i32 = arith.constant 0 : i32
    %c0_i32_0 = arith.constant 0 : i32
    %c0_i32_1 = arith.constant 0 : i32
    return %c0_i32, %c0_i32_0 : i32, i32
  }
  func.func @transform_2(%arg0: i32) -> (i32, i32) {
    %c0_i32 = arith.constant 0 : i32
    %c0_i32_0 = arith.constant 0 : i32
    %c0_i32_1 = arith.constant 0 : i32
    return %c0_i32, %c0_i32_0 : i32, i32
  }
  func.func @transform_3(%arg0: i32) -> (i32, i32) {
    %c0_i32 = arith.constant 0 : i32
    %c0_i32_0 = arith.constant 0 : i32
    %c0_i32_1 = arith.constant 0 : i32
    return %c0_i32, %c0_i32_0 : i32, i32
  }
  func.func @transform_4(%arg0: i32) -> i32 {
    %c0_i32 = arith.constant 0 : i32
    %c0_i32_0 = arith.constant 0 : i32
    return %c0_i32 : i32
  }
  func.func @transform_5(%arg0: i32) -> (i32, i32, i32) {
    %c0_i32 = arith.constant 0 : i32
    %c0_i32_0 = arith.constant 0 : i32
    %c0_i32_1 = arith.constant 0 : i32
    return %arg0, %c0_i32, %c0_i32_0 : i32, i32, i32
  }
}

</mosaic_0001>

<llo_original>
// kernel: projection_head_forward.1
$region0: #{projection_head_forward.1}
  #allocation0 [shape = 'u32[]', space=smem, size = 0x4, offset = 0x4, fixed_abs, tag = 'smem constant byte address 0x4 - core index']
  #allocation1 [shape = 'u32[144,128]{1,0:T(1,128)}', space=vmem, size = 0x12000, scoped, tag = 'internal scratch']
  #allocation2 [shape = 'f32[1]{0:T(128)S(6)}', space=smem, size = 0x200, scoped, tag = 'scoped memory for projection_head_forward.1']
  %s0 = inlined_call_operand.vmem [shape: f32[128,16], index: 0, kind: input, shape index: {}]
  %s1 = inlined_call_operand.vmem [shape: f32[16,32], index: 1, kind: input, shape index: {}]
  %s2 = inlined_call_operand.vmem [shape: f32[1,32], index: 2, kind: input, shape index: {}]
  %s3 = inlined_call_operand.vmem [shape: f32[1,32], index: 3, kind: input, shape index: {}]
  %s4 = inlined_call_operand.<no memory space> [shape: f32[1], index: 4, kind: input, shape index: {}]
  %s5 = inlined_call_operand.vmem [shape: f32[1,1,128], index: 5, kind: output, shape index: {}]
  %s6 = sld [smem:[#allocation0]]
  $region30: #{projection_head_forward.1} parent=0
    _
  %s8 = ssub.s32 1, %s6
  %s9 = scalar_select 0, %s8, %s6
  %10 = sst [smem:[#allocation2]] %s4
  // Predicated region
  $region2: #{projection_head_forward.1} parent=0 // pred_check
    _
  $region3: #{projection_head_forward.1} parent=0 // pred_check_branch
    %12 = sbr.rel (0) target = $region5
  $region4: #{projection_head_forward.1} parent=0 // pred_region
    _
  $region5: #{projection_head_forward.1} parent=0 // pred_fallthru
    _
  // Predicated region
  $region6: #{projection_head_forward.1} parent=0 // pred_check
    _
  $region7: #{projection_head_forward.1} parent=0 // pred_check_branch
    %14 = sbr.rel (0) target = $region9
  $region8: #{projection_head_forward.1} parent=0 // pred_region
    _
  $region9: #{projection_head_forward.1} parent=0 // pred_fallthru
    _
  // Predicated region
  $region10: #{projection_head_forward.1} parent=0 // pred_check
    _
  $region11: #{projection_head_forward.1} parent=0 // pred_check_branch
    %16 = sbr.rel (0) target = $region13
  $region12: #{projection_head_forward.1} parent=0 // pred_region
    _
  $region13: #{projection_head_forward.1} parent=0 // pred_fallthru
    _
  // Predicated region
  $region14: #{projection_head_forward.1} parent=0 // pred_check
    _
  $region15: #{projection_head_forward.1} parent=0 // pred_check_branch
    %18 = sbr.rel (0) target = $region17
  $region16: #{projection_head_forward.1} parent=0 // pred_region
    _
  $region17: #{projection_head_forward.1} parent=0 // pred_fallthru
    _
  // Predicated region
  $region18: #{projection_head_forward.1} parent=0 // pred_check
    _
  $region19: #{projection_head_forward.1} parent=0 // pred_check_branch
    %20 = sbr.rel (0) target = $region21
  $region20: #{projection_head_forward.1} parent=0 // pred_region
    _
  $region21: #{projection_head_forward.1} parent=0 // pred_fallthru
    _
  %v21 = vld [vmem:[%s1] sm:$0xff]
  %v22 = vld [vmem:[%s1 + $0x8] sm:$0xff]
  %v23 = vld [vmem:[%s2] sm:$0x1]
  %v24 = vld [vmem:[%s3] sm:$0x1]
  %s25 = sld [smem:[#allocation2]]
  %v26 = vld [vmem:[%s0] sm:$0xff]
  %v27 = vld [vmem:[%s0 + $0x8] sm:$0xff]
  %v28 = vld [vmem:[%s0 + $0x10] sm:$0xff]
  %v29 = vld [vmem:[%s0 + $0x18] sm:$0xff]
  %v30 = vld [vmem:[%s0 + $0x20] sm:$0xff]
  %v31 = vld [vmem:[%s0 + $0x28] sm:$0xff]
  %v32 = vld [vmem:[%s0 + $0x30] sm:$0xff]
  %v33 = vld [vmem:[%s0 + $0x38] sm:$0xff]
  %v34 = vld [vmem:[%s0 + $0x40] sm:$0xff]
  %v35 = vld [vmem:[%s0 + $0x48] sm:$0xff]
  %v36 = vld [vmem:[%s0 + $0x50] sm:$0xff]
  %v37 = vld [vmem:[%s0 + $0x58] sm:$0xff]
  %v38 = vld [vmem:[%s0 + $0x60] sm:$0xff]
  %v39 = vld [vmem:[%s0 + $0x68] sm:$0xff]
  %v40 = vld [vmem:[%s0 + $0x70] sm:$0xff]
  %v41 = vld [vmem:[%s0 + $0x78] sm:$0xff]
  %v43 = vlaneseq
  %v44 = vshrl.u32 %v43, 7
  %v45 = vsub.s32 0, %v44
  %v46 = vrot.slane %v23, %v45
  %vm48 = vcmask 130048
  %v50 = vsel %vm48, %v26, 0
  %v53 = vsel %vm48, %v27, 0
  %v56 = vsel %vm48, %v28, 0
  %v59 = vsel %vm48, %v29, 0
  %v62 = vsel %vm48, %v30, 0
  %v65 = vsel %vm48, %v31, 0
  %v68 = vsel %vm48, %v32, 0
  %v71 = vsel %vm48, %v33, 0
  %v74 = vsel %vm48, %v34, 0
  %v77 = vsel %vm48, %v35, 0
  %v80 = vsel %vm48, %v36, 0
  %v83 = vsel %vm48, %v37, 0
  %v86 = vsel %vm48, %v38, 0
  %v89 = vsel %vm48, %v39, 0
  %v92 = vsel %vm48, %v40, 0
  %v95 = vsel %vm48, %v41, 0
  %97 = vmatprep.subr.mxu0 0.0
  %98 = vmatpush1.msra.mxu0 %v21
  %99 = vmatprep.subr.mxu0 0.0
  %100 = vmatpush1.msra.mxu0 %v22
  %101 = vmatprep.subr.mxu0 0.0
  %102 = vmatpush1.msra.mxu0 0.0
  %103 = vmatprep.subr.mxu0 0.0
  %104 = vmatpush1.msra.mxu0 0.0
  %105 = vmatprep.subr.mxu0 0.0
  %106 = vmatpush1.msra.mxu0 0.0
  %107 = vmatprep.subr.mxu0 0.0
  %108 = vmatpush1.msra.mxu0 0.0
  %109 = vmatprep.subr.mxu0 0.0
  %110 = vmatpush1.msra.mxu0 0.0
  %111 = vmatprep.subr.mxu0 0.0
  %112 = vmatpush1.msra.mxu0 0.0
  %113 = vmatprep.subr.mxu0 0.0
  %114 = vmatpush1.msra.mxu0 0.0
  %115 = vmatprep.subr.mxu0 0.0
  %116 = vmatpush1.msra.mxu0 0.0
  %117 = vmatprep.subr.mxu0 0.0
  %118 = vmatpush1.msra.mxu0 0.0
  %119 = vmatprep.subr.mxu0 0.0
  %120 = vmatpush1.msra.mxu0 0.0
  %121 = vmatprep.subr.mxu0 0.0
  %122 = vmatpush1.msra.mxu0 0.0
  %123 = vmatprep.subr.mxu0 0.0
  %124 = vmatpush1.msra.mxu0 0.0
  %125 = vmatprep.subr.mxu0 0.0
  %126 = vmatpush1.msra.mxu0 0.0
  %127 = vmatprep.subr.mxu0 0.0
  %128 = vmatpush1.msra.mxu0 0.0
  %129 = vmatprep.subr.mxu0 0.0
  %130 = vmatpush1.msra.mxu0 0.0
  %131 = vmatprep.subr.mxu0 0.0
  %132 = vmatpush1.msra.mxu0 0.0
  %133 = vmatprep.subr.mxu0 0.0
  %134 = vmatpush1.msra.mxu0 0.0
  %135 = vmatprep.subr.mxu0 0.0
  %136 = vmatpush1.msra.mxu0 0.0
  %137 = vmatprep.subr.mxu0 0.0
  %138 = vmatpush1.msra.mxu0 0.0
  %139 = vmatprep.subr.mxu0 0.0
  %140 = vmatpush1.msra.mxu0 0.0
  %141 = vmatprep.subr.mxu0 0.0
  %142 = vmatpush1.msra.mxu0 0.0
  %143 = vmatprep.subr.mxu0 0.0
  %144 = vmatpush1.msra.mxu0 0.0
  %145 = vmatprep.subr.mxu0 0.0
  %146 = vmatpush1.msra.mxu0 0.0
  %147 = vmatprep.subr.mxu0 0.0
  %148 = vmatpush1.msra.mxu0 0.0
  %149 = vmatprep.subr.mxu0 0.0
  %150 = vmatpush1.msra.mxu0 0.0
  %151 = vmatprep.subr.mxu0 0.0
  %152 = vmatpush1.msra.mxu0 0.0
  %153 = vmatprep.subr.mxu0 0.0
  %154 = vmatpush1.msra.mxu0 0.0
  %155 = vmatprep.subr.mxu0 0.0
  %156 = vmatpush1.msra.mxu0 0.0
  %157 = vmatprep.subr.mxu0 0.0
  %158 = vmatpush1.msra.mxu0 0.0
  %159 = vmatprep.subr.mxu0 0.0
  %160 = vmatpush1.msra.mxu0 0.0
  %161 = vmatprep.mubr.f32.mxu0 0.0
  %162 = vmatmul.mubr.f32.gmra.mrb[0].mxu0 %v50
  %v163 = vpop.f32.mrb[0].mxu0
  %v164 = vadd.f32 %v46, %v163
  %v165 = vpop.f32.mrb[0].mxu0
  %166 = vmatprep.mubr.f32.mxu0 0.0
  %167 = vmatmul.mubr.f32.gmra.mrb[0].mxu0 %v53
  %v168 = vpop.f32.mrb[0].mxu0
  %v169 = vadd.f32 %v46, %v168
  %v170 = vpop.f32.mrb[0].mxu0
  %171 = vmatprep.mubr.f32.mxu0 0.0
  %172 = vmatmul.mubr.f32.gmra.mrb[0].mxu0 %v56
  %v173 = vpop.f32.mrb[0].mxu0
  %v174 = vadd.f32 %v46, %v173
  %v175 = vpop.f32.mrb[0].mxu0
  %176 = vmatprep.mubr.f32.mxu0 0.0
  %177 = vmatmul.mubr.f32.gmra.mrb[0].mxu0 %v59
  %v178 = vpop.f32.mrb[0].mxu0
  %v179 = vadd.f32 %v46, %v178
  %v180 = vpop.f32.mrb[0].mxu0
  %181 = vmatprep.mubr.f32.mxu0 0.0
  %182 = vmatmul.mubr.f32.gmra.mrb[0].mxu0 %v62
  %v183 = vpop.f32.mrb[0].mxu0
  %v184 = vadd.f32 %v46, %v183
  %v185 = vpop.f32.mrb[0].mxu0
  %186 = vmatprep.mubr.f32.mxu0 0.0
  %187 = vmatmul.mubr.f32.gmra.mrb[0].mxu0 %v65
  %v188 = vpop.f32.mrb[0].mxu0
  %v189 = vadd.f32 %v46, %v188
  %v190 = vpop.f32.mrb[0].mxu0
  %191 = vmatprep.mubr.f32.mxu0 0.0
  %192 = vmatmul.mubr.f32.gmra.mrb[0].mxu0 %v68
  %v193 = vpop.f32.mrb[0].mxu0
  %v194 = vadd.f32 %v46, %v193
  %v195 = vpop.f32.mrb[0].mxu0
  %196 = vmatprep.mubr.f32.mxu0 0.0
  %197 = vmatmul.mubr.f32.gmra.mrb[0].mxu0 %v71
  %v198 = vpop.f32.mrb[0].mxu0
  %v199 = vadd.f32 %v46, %v198
  %v200 = vpop.f32.mrb[0].mxu0
  %201 = vmatprep.mubr.f32.mxu0 0.0
  %202 = vmatmul.mubr.f32.gmra.mrb[0].mxu0 %v74
  %v203 = vpop.f32.mrb[0].mxu0
  %v204 = vadd.f32 %v46, %v203
  %v205 = vpop.f32.mrb[0].mxu0
  %206 = vmatprep.mubr.f32.mxu0 0.0
  %207 = vmatmul.mubr.f32.gmra.mrb[0].mxu0 %v77
  %v208 = vpop.f32.mrb[0].mxu0
  %v209 = vadd.f32 %v46, %v208
  %v210 = vpop.f32.mrb[0].mxu0
  %211 = vmatprep.mubr.f32.mxu0 0.0
  %212 = vmatmul.mubr.f32.gmra.mrb[0].mxu0 %v80
  %v213 = vpop.f32.mrb[0].mxu0
  %v214 = vadd.f32 %v46, %v213
  %v215 = vpop.f32.mrb[0].mxu0
  %216 = vmatprep.mubr.f32.mxu0 0.0
  %217 = vmatmul.mubr.f32.gmra.mrb[0].mxu0 %v83
  %v218 = vpop.f32.mrb[0].mxu0
  %v219 = vadd.f32 %v46, %v218
  %v220 = vpop.f32.mrb[0].mxu0
  %221 = vmatprep.mubr.f32.mxu0 0.0
  %222 = vmatmul.mubr.f32.gmra.mrb[0].mxu0 %v86
  %v223 = vpop.f32.mrb[0].mxu0
  %v224 = vadd.f32 %v46, %v223
  %v225 = vpop.f32.mrb[0].mxu0
  %226 = vmatprep.mubr.f32.mxu0 0.0
  %227 = vmatmul.mubr.f32.gmra.mrb[0].mxu0 %v89
  %v228 = vpop.f32.mrb[0].mxu0
  %v229 = vadd.f32 %v46, %v228
  %v230 = vpop.f32.mrb[0].mxu0
  %231 = vmatprep.mubr.f32.mxu0 0.0
  %232 = vmatmul.mubr.f32.gmra.mrb[0].mxu0 %v92
  %v233 = vpop.f32.mrb[0].mxu0
  %v234 = vadd.f32 %v46, %v233
  %v235 = vpop.f32.mrb[0].mxu0
  %236 = vmatprep.mubr.f32.mxu0 0.0
  %237 = vmatmul.mubr.f32.gmra.mrb[0].mxu0 %v95
  %v238 = vpop.f32.mrb[0].mxu0
  %v239 = vadd.f32 %v46, %v238
  %v240 = vpop.f32.mrb[0].mxu0
  %241 = vdwg.mxu0
  %v242 = vmul.f32 %v164, 0.5
  %v243 = vmul.f32 %v169, 0.5
  %v244 = vmul.f32 %v174, 0.5
  %v245 = vmul.f32 %v179, 0.5
  %v246 = vmul.f32 %v184, 0.5
  %v247 = vmul.f32 %v189, 0.5
  %v248 = vmul.f32 %v194, 0.5
  %v249 = vmul.f32 %v199, 0.5
  %v250 = vmul.f32 %v204, 0.5
  %v251 = vmul.f32 %v209, 0.5
  %v252 = vmul.f32 %v214, 0.5
  %v253 = vmul.f32 %v219, 0.5
  %v254 = vmul.f32 %v224, 0.5
  %v255 = vmul.f32 %v229, 0.5
  %v256 = vmul.f32 %v234, 0.5
  %v257 = vmul.f32 %v239, 0.5
  %v258 = vmul.f32 %v164, 0.70710677
  %v259 = vmul.f32 %v169, 0.70710677
  %v260 = vmul.f32 %v174, 0.70710677
  %v261 = vmul.f32 %v179, 0.70710677
  %v262 = vmul.f32 %v184, 0.70710677
  %v263 = vmul.f32 %v189, 0.70710677
  %v264 = vmul.f32 %v194, 0.70710677
  %v265 = vmul.f32 %v199, 0.70710677
  %v266 = vmul.f32 %v204, 0.70710677
  %v267 = vmul.f32 %v209, 0.70710677
  %v268 = vmul.f32 %v214, 0.70710677
  %v269 = vmul.f32 %v219, 0.70710677
  %v270 = vmul.f32 %v224, 0.70710677
  %v271 = vmul.f32 %v229, 0.70710677
  %v272 = vmul.f32 %v234, 0.70710677
  %v273 = vmul.f32 %v239, 0.70710677
  %v274 = verf.f32.pop %v258
  %v275 = verf.f32.pop %v259
  %v276 = verf.f32.pop %v260
  %v277 = verf.f32.pop %v261
  %v278 = verf.f32.pop %v262
  %v279 = verf.f32.pop %v263
  %v280 = verf.f32.pop %v264
  %v281 = verf.f32.pop %v265
  %v282 = verf.f32.pop %v266
  %v283 = verf.f32.pop %v267
  %v284 = verf.f32.pop %v268
  %v285 = verf.f32.pop %v269
  %v286 = verf.f32.pop %v270
  %v287 = verf.f32.pop %v271
  %v288 = verf.f32.pop %v272
  %v289 = verf.f32.pop %v273
  %v290 = vadd.f32 %v274, 1.0
  %v291 = vadd.f32 %v275, 1.0
  %v292 = vadd.f32 %v276, 1.0
  %v293 = vadd.f32 %v277, 1.0
  %v294 = vadd.f32 %v278, 1.0
  %v295 = vadd.f32 %v279, 1.0
  %v296 = vadd.f32 %v280, 1.0
  %v297 = vadd.f32 %v281, 1.0
  %v298 = vadd.f32 %v282, 1.0
  %v299 = vadd.f32 %v283, 1.0
  %v300 = vadd.f32 %v284, 1.0
  %v301 = vadd.f32 %v285, 1.0
  %v302 = vadd.f32 %v286, 1.0
  %v303 = vadd.f32 %v287, 1.0
  %v304 = vadd.f32 %v288, 1.0
  %v305 = vadd.f32 %v289, 1.0
  %v306 = vmul.f32 %v242, %v290
  %v307 = vmul.f32 %v243, %v291
  %v308 = vmul.f32 %v244, %v292
  %v309 = vmul.f32 %v245, %v293
  %v310 = vmul.f32 %v246, %v294
  %v311 = vmul.f32 %v247, %v295
  %v312 = vmul.f32 %v248, %v296
  %v313 = vmul.f32 %v249, %v297
  %v314 = vmul.f32 %v250, %v298
  %v315 = vmul.f32 %v251, %v299
  %v316 = vmul.f32 %v252, %v300
  %v317 = vmul.f32 %v253, %v301
  %v318 = vmul.f32 %v254, %v302
  %v319 = vmul.f32 %v255, %v303
  %v320 = vmul.f32 %v256, %v304
  %v321 = vmul.f32 %v257, %v305
  %v322 = vstv %s25
  %vm323 = vcmask 261120
  %v325 = vsel %vm323, %v24, 0
  %v328 = vsel %vm323, %v306, 0
  %v331 = vsel %vm323, %v307, 0
  %v334 = vsel %vm323, %v308, 0
  %v337 = vsel %vm323, %v309, 0
  %v340 = vsel %vm323, %v310, 0
  %v343 = vsel %vm323, %v311, 0
  %v346 = vsel %vm323, %v312, 0
  %v349 = vsel %vm323, %v313, 0
  %v352 = vsel %vm323, %v314, 0
  %v355 = vsel %vm323, %v315, 0
  %v358 = vsel %vm323, %v316, 0
  %v361 = vsel %vm323, %v317, 0
  %v364 = vsel %vm323, %v318, 0
  %v367 = vsel %vm323, %v319, 0
  %v370 = vsel %vm323, %v320, 0
  %v373 = vsel %vm323, %v321, 0
  %375 = vmatprep.subr.mxu0 0.0
  %376 = vmatpush1.xpose.msra.mxu0 %v328
  %377 = vmatprep.subr.mxu0 0.0
  %378 = vmatpush1.xpose.msra.mxu0 %v331
  %379 = vmatprep.subr.mxu0 0.0
  %380 = vmatpush1.xpose.msra.mxu0 %v334
  %381 = vmatprep.subr.mxu0 0.0
  %382 = vmatpush1.xpose.msra.mxu0 %v337
  %383 = vmatprep.subr.mxu0 0.0
  %384 = vmatpush1.xpose.msra.mxu0 %v340
  %385 = vmatprep.subr.mxu0 0.0
  %386 = vmatpush1.xpose.msra.mxu0 %v343
  %387 = vmatprep.subr.mxu0 0.0
  %388 = vmatpush1.xpose.msra.mxu0 %v346
  %389 = vmatprep.subr.mxu0 0.0
  %390 = vmatpush1.xpose.msra.mxu0 %v349
  %391 = vmatprep.subr.mxu0 0.0
  %392 = vmatpush1.xpose.msra.mxu0 %v352
  %393 = vmatprep.subr.mxu0 0.0
  %394 = vmatpush1.xpose.msra.mxu0 %v355
  %395 = vmatprep.subr.mxu0 0.0
  %396 = vmatpush1.xpose.msra.mxu0 %v358
  %397 = vmatprep.subr.mxu0 0.0
  %398 = vmatpush1.xpose.msra.mxu0 %v361
  %399 = vmatprep.subr.mxu0 0.0
  %400 = vmatpush1.xpose.msra.mxu0 %v364
  %401 = vmatprep.subr.mxu0 0.0
  %402 = vmatpush1.xpose.msra.mxu0 %v367
  %403 = vmatprep.subr.mxu0 0.0
  %404 = vmatpush1.xpose.msra.mxu0 %v370
  %405 = vmatprep.subr.mxu0 0.0
  %406 = vmatpush1.xpose.msra.mxu0 %v373
  %407 = vmatprep.subr.mxu0 0.0
  %408 = vmatpush1.xpose.msra.mxu0 0.0
  %409 = vmatprep.subr.mxu0 0.0
  %410 = vmatpush1.xpose.msra.mxu0 0.0
  %411 = vmatprep.subr.mxu0 0.0
  %412 = vmatpush1.xpose.msra.mxu0 0.0
  %413 = vmatprep.subr.mxu0 0.0
  %414 = vmatpush1.xpose.msra.mxu0 0.0
  %415 = vmatprep.subr.mxu0 0.0
  %416 = vmatpush1.xpose.msra.mxu0 0.0
  %417 = vmatprep.subr.mxu0 0.0
  %418 = vmatpush1.xpose.msra.mxu0 0.0
  %419 = vmatprep.subr.mxu0 0.0
  %420 = vmatpush1.xpose.msra.mxu0 0.0
  %421 = vmatprep.subr.mxu0 0.0
  %422 = vmatpush1.xpose.msra.mxu0 0.0
  %423 = vmatprep.subr.mxu0 0.0
  %424 = vmatpush1.xpose.msra.mxu0 0.0
  %425 = vmatprep.subr.mxu0 0.0
  %426 = vmatpush1.xpose.msra.mxu0 0.0
  %427 = vmatprep.subr.mxu0 0.0
  %428 = vmatpush1.xpose.msra.mxu0 0.0
  %429 = vmatprep.subr.mxu0 0.0
  %430 = vmatpush1.xpose.msra.mxu0 0.0
  %431 = vmatprep.subr.mxu0 0.0
  %432 = vmatpush1.xpose.msra.mxu0 0.0
  %433 = vmatprep.subr.mxu0 0.0
  %434 = vmatpush1.xpose.msra.mxu0 0.0
  %435 = vmatprep.subr.mxu0 0.0
  %436 = vmatpush1.xpose.msra.mxu0 0.0
  %437 = vmatprep.subr.mxu0 0.0
  %438 = vmatpush1.xpose.msra.mxu0 0.0
  %439 = vmatprep.mubr.f32.mxu0 0.0
  %440 = vmatmul.mubr.f32.gmra.mrb[0].mxu0 %v325
  %v441 = vpop.f32.mrb[0].mxu0
  %v442 = vadd.f32 %v322, %v441
  %v443 = vpop.f32.mrb[0].mxu0
  %444 = vdwg.mxu0
  %445 = vst [vmem:[%s5] sm:$0x1] %v442
  // Predicated region
  $region22: #{projection_head_forward.1} parent=0 // pred_check
    _
  $region23: #{projection_head_forward.1} parent=0 // pred_check_branch
    %447 = sbr.rel (0) target = $region25
  $region24: #{projection_head_forward.1} parent=0 // pred_region
    _
  $region25: #{projection_head_forward.1} parent=0 // pred_fallthru
    _
  // Predicated region
  $region26: #{projection_head_forward.1} parent=0 // pred_check
    _
  $region27: #{projection_head_forward.1} parent=0 // pred_check_branch
    %449 = sbr.rel (0) target = $region29
  $region28: #{projection_head_forward.1} parent=0 // pred_region
    _
  $region29: #{projection_head_forward.1} parent=0 // pred_fallthru
    _

</llo_original>
